<compile_context>
chip_gen: v5e
topology: v5e:2x2
jax: 0.10.0
libtpu: 0.0.40
codegen_flags: <defaults>
</compile_context>

<pallas_src>
import functools
import math

import jax
import jax.numpy as jnp
from jax.experimental import pallas as pl
from jax.experimental.pallas import tpu as pltpu


_L_MAX = 32768  # guard against lcm(C, 128) blow-up for C nearly coprime with 128


def _round_up(x, m):
    return ((x + m - 1) // m) * m


def _tile_budget_bytes():
    """(per-input tile budget, scoped-VMEM limit) by TPU generation."""
    try:
        kind = jax.devices()[0].device_kind.lower()
    except Exception:
        kind = ""
    if "v7" in kind:                     # 64 MiB physical VMEM per core
        return 2 * 1024 * 1024, 48 * 1024 * 1024
    if "v2" in kind or "v3" in kind:     # small VMEM on older generations
        return 1 * 1024 * 1024, 12 * 1024 * 1024
    # v5e / v6e: 128 MiB physical VMEM, raise the scoped limit for big tiles.
    return 4 * 1024 * 1024, 80 * 1024 * 1024


def _wbce_partial_kernel(o_ref, t_ref, out_ref, *, total_rows, need_mask):
    """Accumulate un-weighted BCE partials into a resident (8, L) f32 block."""
    i = pl.program_id(0)

    @pl.when(i == 0)
    def _():
        out_ref[...] = jnp.zeros_like(out_ref)

    o = o_ref[...].astype(jnp.float32)       # (TB, L)  cast in-kernel only
    t = t_ref[...].astype(jnp.float32)       # (TB, L)

    # binary_cross_entropy with reduction='none' (PyTorch clamps log at -100).
    log_o = jnp.maximum(jnp.log(o), -100.0)
    log_1mo = jnp.maximum(jnp.log(1.0 - o), -100.0)
    bce = -(t * log_o + (1.0 - t) * log_1mo)

    if need_mask:
        # Ragged last tile: rows >= total_rows are out-of-bounds garbage.
        tb = o_ref.shape[0]
        row_ids = jax.lax.broadcasted_iota(jnp.int32, (tb, 1), 0)
        rows_valid = total_rows - i * tb
        bce = jnp.where(row_ids < rows_valid, bce, 0.0)

    # Fold the tile down to an (8, L) vector partial with plain VPU adds
    # (no cross-lane reduce, no per-tile divide).
    tb, l = bce.shape
    out_ref[...] += bce.reshape(tb // 8, 8, l).sum(axis=0)


def weighted_bce_loss(outputs, targets, class_weights_vec, *, max_tile_rows=None):
    """outputs, targets: (B, C) arrays in [0, 1]; class_weights_vec: (C,)."""
    B, C = outputs.shape
    N = B * C
    w = class_weights_vec.astype(jnp.float32).reshape(-1)

    lcm = C * 128 // math.gcd(C, 128)
    if lcm <= _L_MAX:
        # Lane-dense (R, L) view of the row-major flattened data; L is a
        # multiple of both 128 and C so lane j always holds class (j % C).
        L = lcm
        o_flat = outputs.reshape(-1)
        t_flat = targets.reshape(-1)
        pad = (-N) % L
        if pad:
            # Only the sub-L remainder is padded (< L fill elements with
            # o=1, t=1, which contribute exactly 0 BCE).  When N % L == 0
            # (common for batch sizes that are multiples of 128/gcd(C,128))
            # this branch is skipped and the reshape below is a free bitcast.
            # TODO(synk): for N % L != 0 the concatenate still rewrites the
            # inputs once; a fully copy-free path needs manual sub-row DMA.
            o_flat = jnp.concatenate(
                [o_flat, jnp.ones((pad,), dtype=outputs.dtype)])
            t_flat = jnp.concatenate(
                [t_flat, jnp.ones((pad,), dtype=targets.dtype)])
        R = (N + pad) // L
        o2 = o_flat.reshape(R, L)
        t2 = t_flat.reshape(R, L)
        w_row = jnp.tile(w, L // C).reshape(1, L)
    else:
        # lcm blow-up guard: pad the class dim of each sample to a multiple of
        # 128 instead (padded classes: o=1, t=1 -> 0 BCE, and weight 0).
        L = _round_up(C, 128)
        R = B
        o2 = jnp.pad(outputs, ((0, 0), (0, L - C)), constant_values=1.0)
        t2 = jnp.pad(targets, ((0, 0), (0, L - C)), constant_values=1.0)
        w_row = jnp.concatenate(
            [w, jnp.zeros((L - C,), jnp.float32)]).reshape(1, L)

    # Tile rows: dtype-aware sublane multiple, sized for ~2-4 MiB of input per
    # grid step (per generation) so per-step overhead (~0.35 us) is amortized
    # while double-buffered inputs + f32 intermediates stay within the scoped
    # VMEM limit.
    tile_bytes, vmem_limit = _tile_budget_bytes()
    itemsize = max(outputs.dtype.itemsize, targets.dtype.itemsize)
    sub = max(8, 32 // min(outputs.dtype.itemsize, targets.dtype.itemsize))
    cap_rows = max(sub, (tile_bytes // (L * itemsize)) // sub * sub)
    TB = max(sub, min(cap_rows, _round_up(R, sub)))
    if max_tile_rows is not None:
        TB = max(sub, min(TB, _round_up(max_tile_rows, sub)))
    grid = pl.cdiv(R, TB)

    kernel = functools.partial(
        _wbce_partial_kernel, total_rows=R, need_mask=(R % TB != 0))

    partials = pl.pallas_call(
        kernel,
        out_shape=jax.ShapeDtypeStruct((8, L), jnp.float32),
        grid_spec=pltpu.PrefetchScalarGridSpec(
            num_scalar_prefetch=0,
            grid=(grid,),
            in_specs=[
                pl.BlockSpec((TB, L), lambda i: (i, 0)),
                pl.BlockSpec((TB, L), lambda i: (i, 0)),
            ],
            out_specs=pl.BlockSpec((8, L), lambda i: (0, 0)),
        ),
        compiler_params=pltpu.CompilerParams(
            dimension_semantics=("arbitrary",),
            vmem_limit_bytes=vmem_limit,
        ),
    )(o2, t2)

    # Hoisted class-weight multiply + mean over the ORIGINAL element count.
    return jnp.sum(partials * w_row) / jnp.float32(N)


if __name__ == "__main__":
    # Module __init__ takes a dict of class weights -> number of classes C.
    class_weights = {
        "class_0": 1.0,
        "class_1": 2.0,
        "class_2": 0.5,
        "class_3": 1.5,
    }
    weight_keys = list(class_weights.keys())
    C = len(weight_keys)

    # weights[i] = class_weights[label], exactly like the torch loop.
    w_vec = jnp.array([class_weights[k] for k in weight_keys], dtype=jnp.float32)

    def reference(o, t):
        log_o = jnp.maximum(jnp.log(o), -100.0)
        log_1mo = jnp.maximum(jnp.log(1.0 - o), -100.0)
        return jnp.mean(-(t * log_o + (1.0 - t) * log_1mo) * w_vec[None, :])

    key = jax.random.PRNGKey(0)

    # Case 1: module-sized input (B=8, C=4) -- exercises the sub-L remainder.
    k1, k2, key = jax.random.split(key, 3)
    o1 = jax.nn.sigmoid(jax.random.normal(k1, (8, C), dtype=jnp.float32))
    t1 = jnp.round(jax.random.uniform(k2, (8, C), dtype=jnp.float32))
    loss1 = weighted_bce_loss(o1, t1, w_vec)
    jax.block_until_ready(loss1)
    ref1 = reference(o1, t1)
    assert jnp.allclose(loss1, ref1, rtol=1e-5, atol=1e-6), (loss1, ref1)

    # Case 2: copy-free path (N % L == 0), multiple grid steps, and a ragged
    # in-kernel-masked last tile (max_tile_rows forces TB=8 -> 2 grid steps).
    k3, k4 = jax.random.split(key)
    o2 = jax.nn.sigmoid(jax.random.normal(k3, (320, C), dtype=jnp.float32))
    t2 = jnp.round(jax.random.uniform(k4, (320, C), dtype=jnp.float32))
    loss2 = weighted_bce_loss(o2, t2, w_vec, max_tile_rows=8)
    jax.block_until_ready(loss2)
    ref2 = reference(o2, t2)
    assert jnp.allclose(loss2, ref2, rtol=1e-5, atol=1e-6), (loss2, ref2)

    print("KERNEL_OK")
</pallas_src>

<mosaic_0001>
module attributes {stable_mosaic.version = 11 : i64} {
  func.func @_wbce_partial_kernel(%arg0: i32, %arg1: memref<8x128xf32, #tpu.memory_space<vmem>>, %arg2: memref<8x128xf32, #tpu.memory_space<vmem>>, %arg3: memref<8x128xf32, #tpu.memory_space<vmem>>) attributes {dimension_semantics = [#tpu.dimension_semantics<arbitrary>], iteration_bounds = array<i64: 1>, scalar_prefetch = 0 : i64, scratch_operands = 0 : i64, tpu.core_type = #tpu.core_type<tc>, window_params = [{transform_indices = @transform_0, window_bounds = array<i64: 8, 128>}, {transform_indices = @transform_1, window_bounds = array<i64: 8, 128>}, {pipeline_mode = #tpu.pipeline_mode<synchronous>, transform_indices = @transform_2, window_bounds = array<i64: 8, 128>}]} {
    %c0_i32 = arith.constant 0 : i32
    %0 = arith.cmpi eq, %arg0, %c0_i32 : i32
    %1 = arith.extui %0 : i1 to i32
    %c0_i32_0 = arith.constant 0 : i32
    %2 = arith.cmpi ne, %1, %c0_i32_0 : i32
    scf.if %2 {
      %cst_14 = arith.constant 0.000000e+00 : f32
      %34 = vector.broadcast %cst_14 : f32 to vector<8x128xf32>
      %c0_15 = arith.constant 0 : index
      %c0_16 = arith.constant 0 : index
      %35 = vector.load %arg3[%c0_15, %c0_16] : memref<8x128xf32, #tpu.memory_space<vmem>>, vector<8x128xf32>
      tpu.vector_store %arg3[%c0_15, %c0_16], %34 {strides = array<i32>} : memref<8x128xf32, #tpu.memory_space<vmem>>, vector<8x128xf32>,
    } else {
    }
    %c0 = arith.constant 0 : index
    %c0_1 = arith.constant 0 : index
    %3 = vector.load %arg1[%c0, %c0_1] : memref<8x128xf32, #tpu.memory_space<vmem>>, vector<8x128xf32>
    %c0_2 = arith.constant 0 : index
    %c0_3 = arith.constant 0 : index
    %4 = vector.load %arg2[%c0_2, %c0_3] : memref<8x128xf32, #tpu.memory_space<vmem>>, vector<8x128xf32>
    %5 = math.log %3 : vector<8x128xf32>
    %cst = arith.constant -1.000000e+02 : f32
    %6 = vector.broadcast %cst : f32 to vector<8x128xf32>
    %7 = arith.maximumf %5, %6 : vector<8x128xf32>
    %cst_4 = arith.constant 1.000000e+00 : f32
    %8 = vector.broadcast %cst_4 : f32 to vector<8x128xf32>
    %9 = arith.subf %8, %3 : vector<8x128xf32>
    %10 = math.log %9 : vector<8x128xf32>
    %cst_5 = arith.constant -1.000000e+02 : f32
    %11 = vector.broadcast %cst_5 : f32 to vector<8x128xf32>
    %12 = arith.maximumf %10, %11 : vector<8x128xf32>
    %13 = arith.mulf %4, %7 : vector<8x128xf32>
    %cst_6 = arith.constant 1.000000e+00 : f32
    %14 = vector.broadcast %cst_6 : f32 to vector<8x128xf32>
    %15 = arith.subf %14, %4 : vector<8x128xf32>
    %16 = arith.mulf %15, %12 : vector<8x128xf32>
    %17 = arith.addf %13, %16 : vector<8x128xf32>
    %cst_7 = arith.constant 0.000000e+00 : f32
    %18 = vector.broadcast %cst_7 : f32 to vector<8x128xf32>
    %19 = arith.subf %18, %17 : vector<8x128xf32>
    %20 = tpu.iota {dimensions = array<i32: 0>} : vector<8x1xi32>
    %c8_i32 = arith.constant 8 : i32
    %21 = arith.muli %arg0, %c8_i32 : i32
    %c1_i32 = arith.constant 1 : i32
    %22 = arith.subi %c1_i32, %21 : i32
    %23 = vector.broadcast %22 : i32 to vector<8x1xi32>
    %24 = arith.cmpi slt, %20, %23 : vector<8x1xi32>
    %cst_8 = arith.constant 0.000000e+00 : f32
    %25 = vector.shape_cast %24 : vector<8x1xi1> to vector<8x1xi1>
    %26 = vector.broadcast %25 : vector<8x1xi1> to vector<8x128xi1>
    %27 = vector.broadcast %cst_8 : f32 to vector<8x128xf32>
    %28 = arith.select %26, %19, %27 : vector<8x128xi1>, vector<8x128xf32>
    %c0_9 = arith.constant 0 : index
    %c0_10 = arith.constant 0 : index
    %29 = vector.load %arg3[%c0_9, %c0_10] : memref<8x128xf32, #tpu.memory_space<vmem>>, vector<8x128xf32>
    %30 = vector.shape_cast %28 : vector<8x128xf32> to vector<1x8x128xf32>
    %cst_11 = arith.constant dense<0.000000e+00> : vector<8x128xf32>
    %31 = vector.multi_reduction <add>, %30, %cst_11 [0] : vector<1x8x128xf32> to vector<8x128xf32>
    %32 = arith.addf %29, %31 : vector<8x128xf32>
    %c0_12 = arith.constant 0 : index
    %c0_13 = arith.constant 0 : index
    %33 = vector.load %arg3[%c0_12, %c0_13] : memref<8x128xf32, #tpu.memory_space<vmem>>, vector<8x128xf32>
    tpu.vector_store %arg3[%c0_12, %c0_13], %32 {strides = array<i32>} : memref<8x128xf32, #tpu.memory_space<vmem>>, vector<8x128xf32>,
    return
  }
  func.func @transform_0(%arg0: i32) -> (i32, i32) {
    %c0_i32 = arith.constant 0 : i32
    %c0_i32_0 = arith.constant 0 : i32
    return %arg0, %c0_i32 : i32, i32
  }
  func.func @transform_1(%arg0: i32) -> (i32, i32) {
    %c0_i32 = arith.constant 0 : i32
    %c0_i32_0 = arith.constant 0 : i32
    return %arg0, %c0_i32 : i32, i32
  }
  func.func @transform_2(%arg0: i32) -> (i32, i32) {
    %c0_i32 = arith.constant 0 : i32
    %c0_i32_0 = arith.constant 0 : i32
    %c0_i32_1 = arith.constant 0 : i32
    return %c0_i32, %c0_i32_0 : i32, i32
  }
}

</mosaic_0001>

<llo_original>
// kernel: tpu_custom_call.1
$region0: #{tpu_custom_call.1}
  #allocation0 [shape = 'u32[]', space=smem, size = 0x4, offset = 0x4, fixed_abs, tag = 'smem constant byte address 0x4 - core index']
  #allocation1 [shape = 'u32[72,128]{1,0:T(1,128)}', space=vmem, size = 0x9000, scoped, tag = 'internal scratch']
  %s0 = inlined_call_operand.hbm [shape: f32[1,128], index: 0, kind: input, shape index: {}]
  %s1 = inlined_call_operand.hbm [shape: f32[1,128], index: 1, kind: input, shape index: {}]
  %s2 = inlined_call_operand.hbm [shape: f32[8,128], index: 2, kind: output, shape index: {}]
  %s3 = sld [smem:[#allocation0]]
  $region30: #{tpu_custom_call.1} parent=0
    _
  %s5 = ssub.s32 1, %s3
  %s6 = scalar_select 0, %s5, %s3
  $region1: #{tpu_custom_call.1} parent=0
    #allocation2 [shape = 'u8[4096]{0}', space=vmem, size = 0x1000, scoped, tag = 'input window, operand 0, single buffered']
    #allocation3 [shape = 's32[1]{0}', space=sflag, size = 0x4, scoped, tag = 'scoped memory for tpu_custom_call.1']
    #allocation4 [shape = 's32[1]{0}', space=sflag, size = 0x4, scoped, tag = 'scoped memory for tpu_custom_call.1']
    #allocation5 [shape = 'u8[4096]{0}', space=vmem, size = 0x1000, scoped, tag = 'input window, operand 1, single buffered']
    #allocation6 [shape = 's32[1]{0}', space=sflag, size = 0x4, scoped, tag = 'scoped memory for tpu_custom_call.1']
    #allocation7 [shape = 'u8[4096]{0}', space=vmem, size = 0x1000, scoped, tag = 'output window, operand 0, single buffered']
    %7 = vsyncpa [#allocation3], 0
    %8 = vsyncpa [#allocation6], 0
    %9 = vsyncpa [#allocation4], 0
    // Predicated region
    $region2: #{tpu_custom_call.1} parent=1 // pred_check
      _
    $region3: #{tpu_custom_call.1} parent=1 // pred_check_branch
      %11 = sbr.rel (0) target = $region5
    $region4: #{tpu_custom_call.1} parent=1 // pred_region
      %13 = vsyncadd [#allocation3], 112
      %s14 = sshll.u32 %s0, 4
      %s15 = int_to_ptr.hbm [resolvable:$true] %s14
      %s16 = sshll.u32 [#allocation2], 4
      %s17 = int_to_ptr.vmem [resolvable:$true] %s16
      %22 = dma.hbm_to_vmem [thread:$0]  %s15, 16, %s17, [#allocation3], 16, 16, 1
    $region5: #{tpu_custom_call.1} parent=1 // pred_fallthru
      _
    // Predicated region
    $region6: #{tpu_custom_call.1} parent=1 // pred_check
      _
    $region7: #{tpu_custom_call.1} parent=1 // pred_check_branch
      %24 = sbr.rel (0) target = $region9
    $region8: #{tpu_custom_call.1} parent=1 // pred_region
      %26 = vsyncadd [#allocation6], 112
      %s27 = sshll.u32 %s1, 4
      %s28 = int_to_ptr.hbm [resolvable:$true] %s27
      %s29 = sshll.u32 [#allocation5], 4
      %s30 = int_to_ptr.vmem [resolvable:$true] %s29
      %35 = dma.hbm_to_vmem [thread:$0]  %s28, 16, %s30, [#allocation6], 16, 16, 1
    $region9: #{tpu_custom_call.1} parent=1 // pred_fallthru
      _
    // Predicated region
    $region10: #{tpu_custom_call.1} parent=1 // pred_check
      _
    $region11: #{tpu_custom_call.1} parent=1 // pred_check_branch
      %37 = sbr.rel (0) target = $region13
    $region12: #{tpu_custom_call.1} parent=1 // pred_region
      %39 = dma.done [#allocation3], 128
    $region13: #{tpu_custom_call.1} parent=1 // pred_fallthru
      _
    // Predicated region
    $region14: #{tpu_custom_call.1} parent=1 // pred_check
      _
    $region15: #{tpu_custom_call.1} parent=1 // pred_check_branch
      %41 = sbr.rel (0) target = $region17
    $region16: #{tpu_custom_call.1} parent=1 // pred_region
      %43 = dma.done [#allocation6], 128
    $region17: #{tpu_custom_call.1} parent=1 // pred_fallthru
      _
    %p44 = scmp.eq.s32.totalorder 0, 0
    // Predicated region
    $region18: #{tpu_custom_call.1} parent=1 // pred_check
      %p45 = pneg %p44
    $region19: #{tpu_custom_call.1} parent=1 // pred_check_branch
      %47 = sbr.rel (%p45) target = $region21
    $region20: #{tpu_custom_call.1} parent=1 // pred_region
      %48 = vst [vmem:[#allocation7] sm:$0xff] 0.0
    $region21: #{tpu_custom_call.1} parent=1 // pred_fallthru
      _
    %v49 = vld [vmem:[#allocation2] sm:$0xff]
    %v50 = vld [vmem:[#allocation5] sm:$0xff]
    %v51 = vlog2.pop %v49
    %v52 = vmul.f32 %v51, 0.6931472
    %v53 = vmax.f32 %v52, -100.0
    %v54 = vsub.f32 1.0, %v49
    %v55 = vlog2.pop %v54
    %v56 = vmul.f32 %v55, 0.6931472
    %v57 = vmax.f32 %v56, -100.0
    %v58 = vmul.f32 %v50, %v53
    %v59 = vsub.f32 1.0, %v50
    %v60 = vmul.f32 %v59, %v57
    %v61 = vadd.f32 %v58, %v60
    %v62 = vsub.f32 0.0, %v61
    %v63 = vlaneseq
    %v64 = vshrl.u32 %v63, 7
    %s65 = smul.u32 0, 8
    %s66 = ssub.s32 1, %s65
    %v67 = vstv %s66
    %vm68 = vcmp.lt.s32.totalorder %v64, %v67
    %v69 = vsel %vm68, 1, 0
    %vm70 = vcmp.eq.s32.totalorder %v69, 1
    %v71 = vsel %vm70, %v62, 0.0
    %v72 = vld [vmem:[#allocation7] sm:$0xff]
    %v73 = vadd.f32 %v71, 0.0
    %v74 = vadd.f32 %v72, %v73
    %75 = vst [vmem:[#allocation7] sm:$0xff] %v74
    // Predicated region
    $region22: #{tpu_custom_call.1} parent=1 // pred_check
      _
    $region23: #{tpu_custom_call.1} parent=1 // pred_check_branch
      %77 = sbr.rel (0) target = $region25
    $region24: #{tpu_custom_call.1} parent=1 // pred_region
      %79 = vsyncadd [#allocation4], 0
      %s81 = sshll.u32 [#allocation7], 4
      %s82 = int_to_ptr.vmem [resolvable:$true] %s81
      %s83 = sshll.u32 %s2, 4
      %s84 = int_to_ptr.hbm [resolvable:$true] %s83
      %86 = dma.vmem_to_hbm [thread:$0]  %s82, 128, %s84, [#allocation4]
    $region25: #{tpu_custom_call.1} parent=1 // pred_fallthru
      _
    // Predicated region
    $region26: #{tpu_custom_call.1} parent=1 // pred_check
      _
    $region27: #{tpu_custom_call.1} parent=1 // pred_check_branch
      %88 = sbr.rel (0) target = $region29
    $region28: #{tpu_custom_call.1} parent=1 // pred_region
      %90 = dma.done [#allocation4], 128
    $region29: #{tpu_custom_call.1} parent=1 // pred_fallthru
      _
    %91 = vsyncpa [#allocation3], 1
    %92 = vsyncpa [#allocation6], 1
    %93 = vsyncpa [#allocation4], 1

</llo_original>
